<compile_context>
chip_gen: v5e
topology: v5e:2x2
jax: 0.10.0
libtpu: 0.0.40
codegen_flags: <defaults>
</compile_context>

<pallas_src>
import jax
import jax.numpy as jnp
from jax import lax
from jax.experimental import pallas as pl
from jax.experimental.pallas import tpu as pltpu

BN_EPS = 1e-5
_NEG_BIG = -1e30          # bias for padded vocab columns -> exp() == 0
_LANE = 128


def _round_up(n, m):
    return (n + m - 1) // m * m


def _vmem_capacity_bytes():
    try:
        return int(pltpu.get_tpu_info().vmem_capacity_bytes)
    except Exception:
        return 64 << 20   # conservative (v7x-sized) fallback


# ----------------------------------------------------------------------------
# Kernel: fused (folded) Linear + log_softmax over the vocab axis.
# ----------------------------------------------------------------------------
def _decoder_kernel(x_ref, w_ref, b_ref, o_ref):
    # MXU matmul with f32 accumulation; post-matmul math stays f32.
    y = jnp.dot(x_ref[...], w_ref[...], preferred_element_type=jnp.float32)
    y = y + b_ref[...]                          # folded Linear+BN bias

    # log_softmax along dim=1 (vocab axis), max-stabilized.
    m = jnp.max(y, axis=1, keepdims=True)
    z = y - m
    lse = jnp.log(jnp.sum(jnp.exp(z), axis=1, keepdims=True))
    o_ref[...] = (z - lse).astype(o_ref.dtype)


# ----------------------------------------------------------------------------
# One-time parameter preparation (outside the hot path).
# ----------------------------------------------------------------------------
def prepare_decoder_params(params, *, compute_dtype=jnp.float32):
    w = params["beta_weight"].astype(jnp.float32)          # (V, T) PyTorch layout
    b = params["beta_bias"].astype(jnp.float32)            # (V,)
    gamma = params["bn_weight"].astype(jnp.float32)
    beta = params["bn_bias"].astype(jnp.float32)
    mean = params["bn_running_mean"].astype(jnp.float32)
    var = params["bn_running_var"].astype(jnp.float32)
    V, T = w.shape

    scale = gamma * lax.rsqrt(var + BN_EPS)                 # (V,)
    w_fused = (w * scale[:, None]).T                        # (T, V)
    b_fused = (b - mean) * scale + beta                     # (V,)

    Vp = _round_up(V, _LANE)
    if Vp != V:
        w_fused = jnp.pad(w_fused, ((0, 0), (0, Vp - V)))
        b_fused = jnp.pad(b_fused, (0, Vp - V), constant_values=_NEG_BIG)

    return {
        "w_fused": w_fused.astype(compute_dtype),           # (T, Vp)
        "b_fused": b_fused.reshape(1, Vp).astype(jnp.float32),
        "vocab_size": V,
        "num_topics": T,
    }


# ----------------------------------------------------------------------------
# Forward pass.
# ----------------------------------------------------------------------------
def decoder_forward(x, prepared, *, max_batch_tile=512, out_dtype=jnp.float32):
    w = prepared["w_fused"]                                  # (T, Vp)
    b = prepared["b_fused"]                                  # (1, Vp)
    T, Vp = w.shape
    V = prepared["vocab_size"]
    B = x.shape[0]

    wbytes = jnp.dtype(w.dtype).itemsize
    obytes = jnp.dtype(out_dtype).itemsize
    granule = 8 if (wbytes == 4 and obytes == 4) else 16    # sublane granule

    vmem_cap = _vmem_capacity_bytes()
    budget = int(0.45 * vmem_cap)                            # tiling budget

    # VMEM accounting: single-buffered resident weight + bias, double-buffered
    # x / output tiles, plus the in-kernel f32 intermediates (y and exp(z)).
    resident = T * Vp * wbytes + Vp * 4
    per_row = 2 * T * wbytes + 2 * Vp * obytes + 2 * Vp * 4
    avail = budget - resident
    if avail < per_row * granule:
        raise ValueError(
            f"folded decoder weight ({resident / 2**20:.1f} MiB) does not fit "
            f"the VMEM budget ({budget / 2**20:.1f} MiB); a vocab-tiled kernel "
            "is required (see TODO).")

    tb_cap = max(granule, (avail // per_row) // granule * granule)

    Bp0 = _round_up(B, granule)
    tb = min(max_batch_tile, Bp0, tb_cap)
    # Guarantee >= 2 grid steps when the batch spans multiple granules so the
    # "parallel" batch axis can shard across both v7x TensorCores.
    if Bp0 > granule:
        tb = min(tb, _round_up(pl.cdiv(Bp0, 2), granule))
    tb = max(granule, tb)
    Bp = _round_up(B, tb)

    # Cast before padding (halves pre-op bytes when compute dtype is bf16).
    xp = x if x.dtype == w.dtype else x.astype(w.dtype)
    if Bp != B:
        xp = jnp.pad(xp, ((0, Bp - B), (0, 0)))

    grid = (Bp // tb,)

    vmem_bytes = (2 * tb * T * wbytes                        # x tiles (dbl-buffered)
                  + T * Vp * wbytes + Vp * 4                 # resident weight + bias
                  + 2 * tb * Vp * obytes                     # out tiles (dbl-buffered)
                  + 2 * tb * Vp * 4)                         # f32 intermediates
    vmem_limit = min(max(vmem_bytes + (4 << 20), 16 << 20),
                     int(0.75 * vmem_cap))                   # never exceed physical

    cost = pl.CostEstimate(
        flops=2 * Bp * T * Vp,
        transcendentals=Bp * Vp,
        bytes_accessed=(xp.size * wbytes + w.size * wbytes + b.size * 4
                        + Bp * Vp * obytes),
    )

    def _call(single_buffer_consts):
        const_kw = (dict(pipeline_mode=pl.Buffered(1))
                    if single_buffer_consts else {})
        return pl.pallas_call(
            _decoder_kernel,
            out_shape=jax.ShapeDtypeStruct((Bp, Vp), out_dtype),
            grid_spec=pltpu.PrefetchScalarGridSpec(
                num_scalar_prefetch=0,
                grid=grid,
                in_specs=[
                    pl.BlockSpec((tb, T), lambda i: (i, 0)),            # x tile
                    pl.BlockSpec((T, Vp), lambda i: (0, 0), **const_kw),  # weight
                    pl.BlockSpec((1, Vp), lambda i: (0, 0), **const_kw),  # bias
                ],
                out_specs=pl.BlockSpec((tb, Vp), lambda i: (i, 0)),
            ),
            compiler_params=pltpu.CompilerParams(
                dimension_semantics=("parallel",),
                vmem_limit_bytes=int(vmem_limit),
            ),
            cost_estimate=cost,
        )(xp, w, b)

    try:
        out = _call(True)
    except Exception:
        # Fallback for jax versions without BlockSpec.pipeline_mode support:
        # default double-buffered resident operands (slightly more VMEM).
        out = _call(False)

    # Slice only when padding was actually added; consumers that can ignore
    # padded columns/rows may take the padded slab and skip this HBM pass.
    if Bp != B or Vp != V:
        out = out[:B, :V]
    return out


# ----------------------------------------------------------------------------
# Parameter init (deterministic, mirrors nn.Linear / nn.BatchNorm1d state).
# ----------------------------------------------------------------------------
def init_decoder_params(key, vocab_size, num_topics):
    kw, kb, kg, kbb, km, kv = jax.random.split(key, 6)
    bound = 1.0 / jnp.sqrt(num_topics)
    return {
        "beta_weight": jax.random.uniform(kw, (vocab_size, num_topics),
                                          minval=-bound, maxval=bound,
                                          dtype=jnp.float32),
        "beta_bias": jax.random.uniform(kb, (vocab_size,),
                                        minval=-bound, maxval=bound,
                                        dtype=jnp.float32),
        "bn_weight": 1.0 + 0.05 * jax.random.normal(kg, (vocab_size,), jnp.float32),
        "bn_bias": 0.05 * jax.random.normal(kbb, (vocab_size,), jnp.float32),
        "bn_running_mean": 0.1 * jax.random.normal(km, (vocab_size,), jnp.float32),
        "bn_running_var": 1.0 + 0.1 * jax.random.uniform(kv, (vocab_size,),
                                                         dtype=jnp.float32),
    }


# ----------------------------------------------------------------------------
# Reference (full module semantics, eval mode) and checks.
# ----------------------------------------------------------------------------
def _reference_f32(x, params):
    y = jnp.dot(x, params["beta_weight"].T,
                precision=lax.Precision.HIGHEST) + params["beta_bias"]
    y = ((y - params["bn_running_mean"])
         / jnp.sqrt(params["bn_running_var"] + BN_EPS)
         * params["bn_weight"] + params["bn_bias"])
    return jax.nn.log_softmax(y, axis=1)


def _check(batch, num_topics, vocab_size, key):
    k_param, k_x = jax.random.split(key)
    params = init_decoder_params(k_param, vocab_size, num_topics)
    prepared = prepare_decoder_params(params)
    x = jax.random.uniform(k_x, (batch, num_topics), dtype=jnp.float32)

    out = jax.block_until_ready(decoder_forward(x, prepared))
    assert out.shape == (batch, vocab_size)

    ref = _reference_f32(x, params)
    err = float(jnp.max(jnp.abs(out - ref)))
    assert jnp.allclose(out, ref, atol=2e-2, rtol=0), f"max abs err {err}"
    # log_softmax sanity: rows sum to 1 in prob space.
    assert jnp.allclose(jnp.sum(jnp.exp(out), axis=1), 1.0, atol=1e-3)


if __name__ == "__main__":
    key = jax.random.PRNGKey(0)
    k0, k1 = jax.random.split(key)

    # Primary small case (aligned vocab, batch fits one f32 granule).
    _check(batch=8, num_topics=32, vocab_size=256, key=k0)
    # Misaligned case exercising batch / vocab padding and the final slice.
    _check(batch=5, num_topics=32, vocab_size=200, key=k1)

    print("KERNEL_OK")
</pallas_src>

<mosaic_0001>
module attributes {stable_mosaic.version = 11 : i64} {
  func.func @_decoder_kernel(%arg0: i32, %arg1: memref<8x32xf32, #tpu.memory_space<vmem>>, %arg2: memref<32x256xf32, #tpu.memory_space<vmem>>, %arg3: memref<1x256xf32, #tpu.memory_space<vmem>>, %arg4: memref<8x256xf32, #tpu.memory_space<vmem>>) attributes {dimension_semantics = [#tpu.dimension_semantics<parallel>], iteration_bounds = array<i64: 1>, scalar_prefetch = 0 : i64, scratch_operands = 0 : i64, tpu.core_type = #tpu.core_type<tc>, window_params = [{transform_indices = @transform_0, window_bounds = array<i64: 8, 32>}, {pipeline_mode = #tpu.pipeline_mode<synchronous>, transform_indices = @transform_1, window_bounds = array<i64: 32, 256>}, {pipeline_mode = #tpu.pipeline_mode<synchronous>, transform_indices = @transform_2, window_bounds = array<i64: 1, 256>}, {transform_indices = @transform_3, window_bounds = array<i64: 8, 256>}]} {
    %c0 = arith.constant 0 : index
    %c0_0 = arith.constant 0 : index
    %0 = vector.load %arg1[%c0, %c0_0] : memref<8x32xf32, #tpu.memory_space<vmem>>, vector<8x32xf32>
    %c0_1 = arith.constant 0 : index
    %c0_2 = arith.constant 0 : index
    %1 = vector.load %arg2[%c0_1, %c0_2] : memref<32x256xf32, #tpu.memory_space<vmem>>, vector<32x256xf32>
    %cst = arith.constant dense<0.000000e+00> : vector<8x256xf32>
    %2 = tpu.matmul %0, %1, %cst {dimension_numbers = #tpu.dot_dimension_numbers<[1], [0], [0], [1], [0, 0, 1, 1], [], []>} : vector<8x32xf32>, vector<32x256xf32>, vector<8x256xf32> -> vector<8x256xf32>
    %c0_3 = arith.constant 0 : index
    %c0_4 = arith.constant 0 : index
    %3 = vector.load %arg3[%c0_3, %c0_4] : memref<1x256xf32, #tpu.memory_space<vmem>>, vector<1x256xf32>
    %4 = vector.broadcast %3 : vector<1x256xf32> to vector<8x256xf32>
    %5 = arith.addf %2, %4 : vector<8x256xf32>
    %cst_5 = arith.constant dense<0xFF800000> : vector<8xf32>
    %6 = vector.multi_reduction <maximumf>, %5, %cst_5 [1] : vector<8x256xf32> to vector<8xf32>
    %7 = vector.shape_cast %6 : vector<8xf32> to vector<8x1xf32>
    %8 = vector.broadcast %7 : vector<8x1xf32> to vector<8x256xf32>
    %9 = arith.subf %5, %8 : vector<8x256xf32>
    %10 = math.exp %9 : vector<8x256xf32>
    %cst_6 = arith.constant dense<0.000000e+00> : vector<8xf32>
    %11 = vector.multi_reduction <add>, %10, %cst_6 [1] : vector<8x256xf32> to vector<8xf32>
    %12 = vector.shape_cast %11 : vector<8xf32> to vector<8x1xf32>
    %13 = math.log %12 : vector<8x1xf32>
    %14 = vector.broadcast %13 : vector<8x1xf32> to vector<8x256xf32>
    %15 = arith.subf %9, %14 : vector<8x256xf32>
    %c0_7 = arith.constant 0 : index
    %c0_8 = arith.constant 0 : index
    %16 = vector.load %arg4[%c0_7, %c0_8] : memref<8x256xf32, #tpu.memory_space<vmem>>, vector<8x256xf32>
    tpu.vector_store %arg4[%c0_7, %c0_8], %15 {strides = array<i32>} : memref<8x256xf32, #tpu.memory_space<vmem>>, vector<8x256xf32>,
    return
  }
  func.func @transform_0(%arg0: i32) -> (i32, i32) {
    %c0_i32 = arith.constant 0 : i32
    %c0_i32_0 = arith.constant 0 : i32
    return %arg0, %c0_i32 : i32, i32
  }
  func.func @transform_1(%arg0: i32) -> (i32, i32) {
    %c0_i32 = arith.constant 0 : i32
    %c0_i32_0 = arith.constant 0 : i32
    %c0_i32_1 = arith.constant 0 : i32
    return %c0_i32, %c0_i32_0 : i32, i32
  }
  func.func @transform_2(%arg0: i32) -> (i32, i32) {
    %c0_i32 = arith.constant 0 : i32
    %c0_i32_0 = arith.constant 0 : i32
    %c0_i32_1 = arith.constant 0 : i32
    return %c0_i32, %c0_i32_0 : i32, i32
  }
  func.func @transform_3(%arg0: i32) -> (i32, i32) {
    %c0_i32 = arith.constant 0 : i32
    %c0_i32_0 = arith.constant 0 : i32
    return %arg0, %c0_i32 : i32, i32
  }
}

module attributes {stable_mosaic.version = 11 : i64} {
  func.func @_decoder_kernel(%arg0: i32, %arg1: memref<8x32xf32, #tpu.memory_space<vmem>>, %arg2: memref<32x256xf32, #tpu.memory_space<vmem>>, %arg3: memref<1x256xf32, #tpu.memory_space<vmem>>, %arg4: memref<8x256xf32, #tpu.memory_space<vmem>>) attributes {dimension_semantics = [#tpu.dimension_semantics<parallel>], iteration_bounds = array<i64: 1>, scalar_prefetch = 0 : i64, scratch_operands = 0 : i64, tpu.core_type = #tpu.core_type<tc>, window_params = [{transform_indices = @transform_0, window_bounds = array<i64: 8, 32>}, {pipeline_mode = #tpu.pipeline_mode<synchronous>, transform_indices = @transform_1, window_bounds = array<i64: 32, 256>}, {pipeline_mode = #tpu.pipeline_mode<synchronous>, transform_indices = @transform_2, window_bounds = array<i64: 1, 256>}, {transform_indices = @transform_3, window_bounds = array<i64: 8, 256>}]} {
    %c0 = arith.constant 0 : index
    %c0_0 = arith.constant 0 : index
    %0 = vector.load %arg1[%c0, %c0_0] : memref<8x32xf32, #tpu.memory_space<vmem>>, vector<8x32xf32>
    %c0_1 = arith.constant 0 : index
    %c0_2 = arith.constant 0 : index
    %1 = vector.load %arg2[%c0_1, %c0_2] : memref<32x256xf32, #tpu.memory_space<vmem>>, vector<32x256xf32>
    %cst = arith.constant dense<0.000000e+00> : vector<8x256xf32>
    %2 = tpu.matmul %0, %1, %cst {dimension_numbers = #tpu.dot_dimension_numbers<[1], [0], [0], [1], [0, 0, 1, 1], [], []>} : vector<8x32xf32>, vector<32x256xf32>, vector<8x256xf32> -> vector<8x256xf32>
    %c0_3 = arith.constant 0 : index
    %c0_4 = arith.constant 0 : index
    %3 = vector.load %arg3[%c0_3, %c0_4] : memref<1x256xf32, #tpu.memory_space<vmem>>, vector<1x256xf32>
    %4 = vector.broadcast %3 : vector<1x256xf32> to vector<8x256xf32>
    %5 = arith.addf %2, %4 : vector<8x256xf32>
    %cst_5 = arith.constant dense<0xFF800000> : vector<8xf32>
    %6 = vector.multi_reduction <maximumf>, %5, %cst_5 [1] : vector<8x256xf32> to vector<8xf32>
    %7 = vector.shape_cast %6 : vector<8xf32> to vector<8x1xf32>
    %8 = vector.broadcast %7 : vector<8x1xf32> to vector<8x256xf32>
    %9 = arith.subf %5, %8 : vector<8x256xf32>
    %10 = math.exp %9 : vector<8x256xf32>
    %cst_6 = arith.constant dense<0.000000e+00> : vector<8xf32>
    %11 = vector.multi_reduction <add>, %10, %cst_6 [1] : vector<8x256xf32> to vector<8xf32>
    %12 = vector.shape_cast %11 : vector<8xf32> to vector<8x1xf32>
    %13 = math.log %12 : vector<8x1xf32>
    %14 = vector.broadcast %13 : vector<8x1xf32> to vector<8x256xf32>
    %15 = arith.subf %9, %14 : vector<8x256xf32>
    %c0_7 = arith.constant 0 : index
    %c0_8 = arith.constant 0 : index
    %16 = vector.load %arg4[%c0_7, %c0_8] : memref<8x256xf32, #tpu.memory_space<vmem>>, vector<8x256xf32>
    tpu.vector_store %arg4[%c0_7, %c0_8], %15 {strides = array<i32>} : memref<8x256xf32, #tpu.memory_space<vmem>>, vector<8x256xf32>,
    return
  }
  func.func @transform_0(%arg0: i32) -> (i32, i32) {
    %c0_i32 = arith.constant 0 : i32
    %c0_i32_0 = arith.constant 0 : i32
    return %arg0, %c0_i32 : i32, i32
  }
  func.func @transform_1(%arg0: i32) -> (i32, i32) {
    %c0_i32 = arith.constant 0 : i32
    %c0_i32_0 = arith.constant 0 : i32
    %c0_i32_1 = arith.constant 0 : i32
    return %c0_i32, %c0_i32_0 : i32, i32
  }
  func.func @transform_2(%arg0: i32) -> (i32, i32) {
    %c0_i32 = arith.constant 0 : i32
    %c0_i32_0 = arith.constant 0 : i32
    %c0_i32_1 = arith.constant 0 : i32
    return %c0_i32, %c0_i32_0 : i32, i32
  }
  func.func @transform_3(%arg0: i32) -> (i32, i32) {
    %c0_i32 = arith.constant 0 : i32
    %c0_i32_0 = arith.constant 0 : i32
    return %arg0, %c0_i32 : i32, i32
  }
}

</mosaic_0001>

<llo_original>
// kernel: tpu_custom_call.1
$region0: #{tpu_custom_call.1}
  #allocation0 [shape = 'u32[]', space=smem, size = 0x4, offset = 0x4, fixed_abs, tag = 'smem constant byte address 0x4 - core index']
  #allocation1 [shape = 'u32[72,128]{1,0:T(1,128)}', space=vmem, size = 0x9000, scoped, tag = 'internal scratch']
  %s0 = inlined_call_operand.hbm [shape: f32[8,32], index: 0, kind: input, shape index: {}]
  %s1 = inlined_call_operand.hbm [shape: f32[32,256], index: 1, kind: input, shape index: {}]
  %s2 = inlined_call_operand.hbm [shape: f32[1,256], index: 2, kind: input, shape index: {}]
  %s3 = inlined_call_operand.hbm [shape: f32[8,256], index: 3, kind: output, shape index: {}]
  %s4 = sld [smem:[#allocation0]]
  $region34: #{tpu_custom_call.1} parent=0
    _
  %s6 = ssub.s32 1, %s4
  %s7 = scalar_select 0, %s6, %s4
  $region1: #{tpu_custom_call.1} parent=0
    #allocation2 [shape = 'u8[4096]{0}', space=vmem, size = 0x1000, scoped, tag = 'input window, operand 0, single buffered']
    #allocation3 [shape = 's32[1]{0}', space=sflag, size = 0x4, scoped, tag = 'scoped memory for tpu_custom_call.1']
    #allocation4 [shape = 's32[1]{0}', space=sflag, size = 0x4, scoped, tag = 'scoped memory for tpu_custom_call.1']
    #allocation5 [shape = 'u8[32768]{0}', space=vmem, size = 0x8000, scoped, tag = 'input window, operand 1, single buffered']
    #allocation6 [shape = 's32[1]{0}', space=sflag, size = 0x4, scoped, tag = 'scoped memory for tpu_custom_call.1']
    #allocation7 [shape = 'u8[1024]{0}', space=vmem, size = 0x400, scoped, tag = 'input window, operand 2, single buffered']
    #allocation8 [shape = 'u8[8192]{0}', space=vmem, size = 0x2000, scoped, tag = 'output window, operand 0, single buffered']
    %8 = vsyncpa [#allocation3], 0
    %9 = vsyncpa [#allocation6], 0
    %10 = vsyncpa [#allocation4], 0
    // Predicated region
    $region2: #{tpu_custom_call.1} parent=1 // pred_check
      _
    $region3: #{tpu_custom_call.1} parent=1 // pred_check_branch
      %12 = sbr.rel (0) target = $region5
    $region4: #{tpu_custom_call.1} parent=1 // pred_region
      %14 = vsyncadd [#allocation3], 0
      %s16 = sshll.u32 %s0, 4
      %s17 = int_to_ptr.hbm [resolvable:$true] %s16
      %s18 = sshll.u32 [#allocation2], 4
      %s19 = int_to_ptr.vmem [resolvable:$true] %s18
      %21 = dma.hbm_to_vmem [thread:$0]  %s17, 128, %s19, [#allocation3]
    $region5: #{tpu_custom_call.1} parent=1 // pred_fallthru
      _
    // Predicated region
    $region6: #{tpu_custom_call.1} parent=1 // pred_check
      _
    $region7: #{tpu_custom_call.1} parent=1 // pred_check_branch
      %23 = sbr.rel (0) target = $region9
    $region8: #{tpu_custom_call.1} parent=1 // pred_region
      %25 = vsyncadd [#allocation6], 0
      %s26 = sshll.u32 %s1, 4
      %s27 = int_to_ptr.hbm [resolvable:$true] %s26
      %s28 = sshll.u32 [#allocation5], 4
      %s29 = int_to_ptr.vmem [resolvable:$true] %s28
      %34 = dma.hbm_to_vmem [thread:$0]  %s27, 1024, %s29, [#allocation6], 256, 256, 16
    $region9: #{tpu_custom_call.1} parent=1 // pred_fallthru
      _
    // Predicated region
    $region10: #{tpu_custom_call.1} parent=1 // pred_check
      _
    $region11: #{tpu_custom_call.1} parent=1 // pred_check_branch
      %36 = sbr.rel (0) target = $region13
    $region12: #{tpu_custom_call.1} parent=1 // pred_region
      %38 = vsyncadd [#allocation6], 0
      %s40 = sshll.u32 %s2, 4
      %s41 = int_to_ptr.hbm [resolvable:$true] %s40
      %s42 = sshll.u32 [#allocation7], 4
      %s43 = int_to_ptr.vmem [resolvable:$true] %s42
      %45 = dma.hbm_to_vmem [thread:$0]  %s41, 32, %s43, [#allocation6]
    $region13: #{tpu_custom_call.1} parent=1 // pred_fallthru
      _
    // Predicated region
    $region14: #{tpu_custom_call.1} parent=1 // pred_check
      _
    $region15: #{tpu_custom_call.1} parent=1 // pred_check_branch
      %47 = sbr.rel (0) target = $region17
    $region16: #{tpu_custom_call.1} parent=1 // pred_region
      %49 = dma.done [#allocation3], 128
    $region17: #{tpu_custom_call.1} parent=1 // pred_fallthru
      _
    // Predicated region
    $region18: #{tpu_custom_call.1} parent=1 // pred_check
      _
    $region19: #{tpu_custom_call.1} parent=1 // pred_check_branch
      %51 = sbr.rel (0) target = $region21
    $region20: #{tpu_custom_call.1} parent=1 // pred_region
      %53 = dma.done [#allocation6], 1024
    $region21: #{tpu_custom_call.1} parent=1 // pred_fallthru
      _
    // Predicated region
    $region22: #{tpu_custom_call.1} parent=1 // pred_check
      _
    $region23: #{tpu_custom_call.1} parent=1 // pred_check_branch
      %55 = sbr.rel (0) target = $region25
    $region24: #{tpu_custom_call.1} parent=1 // pred_region
      %57 = dma.done [#allocation6], 32
    $region25: #{tpu_custom_call.1} parent=1 // pred_fallthru
      _
    %v58 = vld [vmem:[#allocation2] sm:$0xff]
    %v59 = vld [vmem:[#allocation5] sm:$0xff]
    %v60 = vld [vmem:[#allocation5 + $0x8] sm:$0xff]
    %v61 = vld [vmem:[#allocation5 + $0x10] sm:$0xff]
    %v62 = vld [vmem:[#allocation5 + $0x18] sm:$0xff]
    %v63 = vld [vmem:[#allocation5 + $0x20] sm:$0xff]
    %v64 = vld [vmem:[#allocation5 + $0x28] sm:$0xff]
    %v65 = vld [vmem:[#allocation5 + $0x30] sm:$0xff]
    %v66 = vld [vmem:[#allocation5 + $0x38] sm:$0xff]
    %v67 = vld [vmem:[#allocation7] sm:$0x3]
    %v69 = vperm.slane %v67, 0
    %v70 = vperm.slane %v67, 1
    %vm73 = vcmask 261120
    %v75 = vsel %vm73, %v58, 0
    %77 = vmatpush.msra.mxu0 0.0
    %78 = vmatpush.msra.mxu0 0.0
    %79 = vmatpush.msra.mxu0 0.0
    %80 = vmatpush.msra.mxu0 0.0
    %81 = vmatpush.msra.mxu0 0.0
    %82 = vmatpush.msra.mxu0 0.0
    %83 = vmatpush.msra.mxu0 0.0
    %84 = vmatpush.msra.mxu0 0.0
    %85 = vmatpush.msra.mxu0 0.0
    %86 = vmatpush.msra.mxu0 0.0
    %87 = vmatpush.msra.mxu0 0.0
    %88 = vmatpush.msra.mxu0 0.0
    %89 = vmatpush.msra.mxu0 %v65
    %90 = vmatpush.msra.mxu0 %v63
    %91 = vmatpush.msra.mxu0 %v61
    %92 = vmatpush.msra.mxu0 %v59
    %93 = vmatmul.f32.gmra.mxu0 %v75
    %v94 = vpop.f32.mrf.mxu0
    %v95 = vadd.f32 %v69, %v94
    %96 = vdwg.mxu0
    %97 = vmatpush.msra.mxu0 0.0
    %98 = vmatpush.msra.mxu0 0.0
    %99 = vmatpush.msra.mxu0 0.0
    %100 = vmatpush.msra.mxu0 0.0
    %101 = vmatpush.msra.mxu0 0.0
    %102 = vmatpush.msra.mxu0 0.0
    %103 = vmatpush.msra.mxu0 0.0
    %104 = vmatpush.msra.mxu0 0.0
    %105 = vmatpush.msra.mxu0 0.0
    %106 = vmatpush.msra.mxu0 0.0
    %107 = vmatpush.msra.mxu0 0.0
    %108 = vmatpush.msra.mxu0 0.0
    %109 = vmatpush.msra.mxu0 %v66
    %110 = vmatpush.msra.mxu0 %v64
    %111 = vmatpush.msra.mxu0 %v62
    %112 = vmatpush.msra.mxu0 %v60
    %113 = vmatmul.f32.gmra.mxu0 %v75
    %v114 = vpop.f32.mrf.mxu0
    %v115 = vadd.f32 %v70, %v114
    %116 = vdwg.mxu0
    %v117 = vmax.f32 %v95, %v115
    %118 = vmax.xlane.f32.xlu0 %v117
    %v119 = vpop.xlane.xlu0 %118
    %v120 = vsub.f32 %v95, %v119
    %v121 = vsub.f32 %v115, %v119
    %v122 = vmul.f32 %v120, 1.442695
    %v123 = vpow.pop %v122
    %v124 = vmul.f32 %v121, 1.442695
    %v125 = vpow.pop %v124
    %v126 = vadd.f32 %v123, %v125
    %127 = vadd.xlane.f32.xlu0 %v126
    %v128 = vpop.xlane.xlu0 %127
    %v129 = vlog2.pop %v128
    %v130 = vmul.f32 %v129, 0.6931472
    %v131 = vsub.f32 %v120, %v130
    %v132 = vsub.f32 %v121, %v130
    %133 = vst [vmem:[#allocation8] sm:$0xff] %v131
    %134 = vst [vmem:[#allocation8 + $0x8] sm:$0xff] %v132
    // Predicated region
    $region26: #{tpu_custom_call.1} parent=1 // pred_check
      _
    $region27: #{tpu_custom_call.1} parent=1 // pred_check_branch
      %136 = sbr.rel (0) target = $region29
    $region28: #{tpu_custom_call.1} parent=1 // pred_region
      %138 = vsyncadd [#allocation4], 0
      %s140 = sshll.u32 [#allocation8], 4
      %s141 = int_to_ptr.vmem [resolvable:$true] %s140
      %s142 = sshll.u32 %s3, 4
      %s143 = int_to_ptr.hbm [resolvable:$true] %s142
      %145 = dma.vmem_to_hbm [thread:$0]  %s141, 256, %s143, [#allocation4]
    $region29: #{tpu_custom_call.1} parent=1 // pred_fallthru
      _
    // Predicated region
    $region30: #{tpu_custom_call.1} parent=1 // pred_check
      _
    $region31: #{tpu_custom_call.1} parent=1 // pred_check_branch
      %147 = sbr.rel (0) target = $region33
    $region32: #{tpu_custom_call.1} parent=1 // pred_region
      %149 = dma.done [#allocation4], 256
    $region33: #{tpu_custom_call.1} parent=1 // pred_fallthru
      _
    %150 = vsyncpa [#allocation3], 1
    %151 = vsyncpa [#allocation6], 1
    %152 = vsyncpa [#allocation4], 1

// kernel: tpu_custom_call.1
$region0: #{tpu_custom_call.1}
  #allocation0 [shape = 'u32[]', space=smem, size = 0x4, offset = 0x4, fixed_abs, tag = 'smem constant byte address 0x4 - core index']
  #allocation1 [shape = 'u32[72,128]{1,0:T(1,128)}', space=vmem, size = 0x9000, scoped, tag = 'internal scratch']
  %s0 = inlined_call_operand.hbm [shape: f32[8,32], index: 0, kind: input, shape index: {}]
  %s1 = inlined_call_operand.hbm [shape: f32[32,256], index: 1, kind: input, shape index: {}]
  %s2 = inlined_call_operand.hbm [shape: f32[1,256], index: 2, kind: input, shape index: {}]
  %s3 = inlined_call_operand.hbm [shape: f32[8,256], index: 3, kind: output, shape index: {}]
  %s4 = sld [smem:[#allocation0]]
  $region34: #{tpu_custom_call.1} parent=0
    _
  %s6 = ssub.s32 1, %s4
  %s7 = scalar_select 0, %s6, %s4
  $region1: #{tpu_custom_call.1} parent=0
    #allocation2 [shape = 'u8[4096]{0}', space=vmem, size = 0x1000, scoped, tag = 'input window, operand 0, single buffered']
    #allocation3 [shape = 's32[1]{0}', space=sflag, size = 0x4, scoped, tag = 'scoped memory for tpu_custom_call.1']
    #allocation4 [shape = 's32[1]{0}', space=sflag, size = 0x4, scoped, tag = 'scoped memory for tpu_custom_call.1']
    #allocation5 [shape = 'u8[32768]{0}', space=vmem, size = 0x8000, scoped, tag = 'input window, operand 1, single buffered']
    #allocation6 [shape = 's32[1]{0}', space=sflag, size = 0x4, scoped, tag = 'scoped memory for tpu_custom_call.1']
    #allocation7 [shape = 'u8[1024]{0}', space=vmem, size = 0x400, scoped, tag = 'input window, operand 2, single buffered']
    #allocation8 [shape = 'u8[8192]{0}', space=vmem, size = 0x2000, scoped, tag = 'output window, operand 0, single buffered']
    %8 = vsyncpa [#allocation3], 0
    %9 = vsyncpa [#allocation6], 0
    %10 = vsyncpa [#allocation4], 0
    // Predicated region
    $region2: #{tpu_custom_call.1} parent=1 // pred_check
      _
    $region3: #{tpu_custom_call.1} parent=1 // pred_check_branch
      %12 = sbr.rel (0) target = $region5
    $region4: #{tpu_custom_call.1} parent=1 // pred_region
      %14 = vsyncadd [#allocation3], 0
      %s16 = sshll.u32 %s0, 4
      %s17 = int_to_ptr.hbm [resolvable:$true] %s16
      %s18 = sshll.u32 [#allocation2], 4
      %s19 = int_to_ptr.vmem [resolvable:$true] %s18
      %21 = dma.hbm_to_vmem [thread:$0]  %s17, 128, %s19, [#allocation3]
    $region5: #{tpu_custom_call.1} parent=1 // pred_fallthru
      _
    // Predicated region
    $region6: #{tpu_custom_call.1} parent=1 // pred_check
      _
    $region7: #{tpu_custom_call.1} parent=1 // pred_check_branch
      %23 = sbr.rel (0) target = $region9
    $region8: #{tpu_custom_call.1} parent=1 // pred_region
      %25 = vsyncadd [#allocation6], 0
      %s26 = sshll.u32 %s1, 4
      %s27 = int_to_ptr.hbm [resolvable:$true] %s26
      %s28 = sshll.u32 [#allocation5], 4
      %s29 = int_to_ptr.vmem [resolvable:$true] %s28
      %34 = dma.hbm_to_vmem [thread:$0]  %s27, 1024, %s29, [#allocation6], 256, 256, 16
    $region9: #{tpu_custom_call.1} parent=1 // pred_fallthru
      _
    // Predicated region
    $region10: #{tpu_custom_call.1} parent=1 // pred_check
      _
    $region11: #{tpu_custom_call.1} parent=1 // pred_check_branch
      %36 = sbr.rel (0) target = $region13
    $region12: #{tpu_custom_call.1} parent=1 // pred_region
      %38 = vsyncadd [#allocation6], 0
      %s40 = sshll.u32 %s2, 4
      %s41 = int_to_ptr.hbm [resolvable:$true] %s40
      %s42 = sshll.u32 [#allocation7], 4
      %s43 = int_to_ptr.vmem [resolvable:$true] %s42
      %45 = dma.hbm_to_vmem [thread:$0]  %s41, 32, %s43, [#allocation6]
    $region13: #{tpu_custom_call.1} parent=1 // pred_fallthru
      _
    // Predicated region
    $region14: #{tpu_custom_call.1} parent=1 // pred_check
      _
    $region15: #{tpu_custom_call.1} parent=1 // pred_check_branch
      %47 = sbr.rel (0) target = $region17
    $region16: #{tpu_custom_call.1} parent=1 // pred_region
      %49 = dma.done [#allocation3], 128
    $region17: #{tpu_custom_call.1} parent=1 // pred_fallthru
      _
    // Predicated region
    $region18: #{tpu_custom_call.1} parent=1 // pred_check
      _
    $region19: #{tpu_custom_call.1} parent=1 // pred_check_branch
      %51 = sbr.rel (0) target = $region21
    $region20: #{tpu_custom_call.1} parent=1 // pred_region
      %53 = dma.done [#allocation6], 1024
    $region21: #{tpu_custom_call.1} parent=1 // pred_fallthru
      _
    // Predicated region
    $region22: #{tpu_custom_call.1} parent=1 // pred_check
      _
    $region23: #{tpu_custom_call.1} parent=1 // pred_check_branch
      %55 = sbr.rel (0) target = $region25
    $region24: #{tpu_custom_call.1} parent=1 // pred_region
      %57 = dma.done [#allocation6], 32
    $region25: #{tpu_custom_call.1} parent=1 // pred_fallthru
      _
    %v58 = vld [vmem:[#allocation2] sm:$0xff]
    %v59 = vld [vmem:[#allocation5] sm:$0xff]
    %v60 = vld [vmem:[#allocation5 + $0x8] sm:$0xff]
    %v61 = vld [vmem:[#allocation5 + $0x10] sm:$0xff]
    %v62 = vld [vmem:[#allocation5 + $0x18] sm:$0xff]
    %v63 = vld [vmem:[#allocation5 + $0x20] sm:$0xff]
    %v64 = vld [vmem:[#allocation5 + $0x28] sm:$0xff]
    %v65 = vld [vmem:[#allocation5 + $0x30] sm:$0xff]
    %v66 = vld [vmem:[#allocation5 + $0x38] sm:$0xff]
    %v67 = vld [vmem:[#allocation7] sm:$0x3]
    %v69 = vperm.slane %v67, 0
    %v70 = vperm.slane %v67, 1
    %vm73 = vcmask 261120
    %v75 = vsel %vm73, %v58, 0
    %77 = vmatpush.msra.mxu0 0.0
    %78 = vmatpush.msra.mxu0 0.0
    %79 = vmatpush.msra.mxu0 0.0
    %80 = vmatpush.msra.mxu0 0.0
    %81 = vmatpush.msra.mxu0 0.0
    %82 = vmatpush.msra.mxu0 0.0
    %83 = vmatpush.msra.mxu0 0.0
    %84 = vmatpush.msra.mxu0 0.0
    %85 = vmatpush.msra.mxu0 0.0
    %86 = vmatpush.msra.mxu0 0.0
    %87 = vmatpush.msra.mxu0 0.0
    %88 = vmatpush.msra.mxu0 0.0
    %89 = vmatpush.msra.mxu0 %v65
    %90 = vmatpush.msra.mxu0 %v63
    %91 = vmatpush.msra.mxu0 %v61
    %92 = vmatpush.msra.mxu0 %v59
    %93 = vmatmul.f32.gmra.mxu0 %v75
    %v94 = vpop.f32.mrf.mxu0
    %v95 = vadd.f32 %v69, %v94
    %96 = vdwg.mxu0
    %97 = vmatpush.msra.mxu0 0.0
    %98 = vmatpush.msra.mxu0 0.0
    %99 = vmatpush.msra.mxu0 0.0
    %100 = vmatpush.msra.mxu0 0.0
    %101 = vmatpush.msra.mxu0 0.0
    %102 = vmatpush.msra.mxu0 0.0
    %103 = vmatpush.msra.mxu0 0.0
    %104 = vmatpush.msra.mxu0 0.0
    %105 = vmatpush.msra.mxu0 0.0
    %106 = vmatpush.msra.mxu0 0.0
    %107 = vmatpush.msra.mxu0 0.0
    %108 = vmatpush.msra.mxu0 0.0
    %109 = vmatpush.msra.mxu0 %v66
    %110 = vmatpush.msra.mxu0 %v64
    %111 = vmatpush.msra.mxu0 %v62
    %112 = vmatpush.msra.mxu0 %v60
    %113 = vmatmul.f32.gmra.mxu0 %v75
    %v114 = vpop.f32.mrf.mxu0
    %v115 = vadd.f32 %v70, %v114
    %116 = vdwg.mxu0
    %v117 = vmax.f32 %v95, %v115
    %118 = vmax.xlane.f32.xlu0 %v117
    %v119 = vpop.xlane.xlu0 %118
    %v120 = vsub.f32 %v95, %v119
    %v121 = vsub.f32 %v115, %v119
    %v122 = vmul.f32 %v120, 1.442695
    %v123 = vpow.pop %v122
    %v124 = vmul.f32 %v121, 1.442695
    %v125 = vpow.pop %v124
    %v126 = vadd.f32 %v123, %v125
    %127 = vadd.xlane.f32.xlu0 %v126
    %v128 = vpop.xlane.xlu0 %127
    %v129 = vlog2.pop %v128
    %v130 = vmul.f32 %v129, 0.6931472
    %v131 = vsub.f32 %v120, %v130
    %v132 = vsub.f32 %v121, %v130
    %133 = vst [vmem:[#allocation8] sm:$0xff] %v131
    %134 = vst [vmem:[#allocation8 + $0x8] sm:$0xff] %v132
    // Predicated region
    $region26: #{tpu_custom_call.1} parent=1 // pred_check
      _
    $region27: #{tpu_custom_call.1} parent=1 // pred_check_branch
      %136 = sbr.rel (0) target = $region29
    $region28: #{tpu_custom_call.1} parent=1 // pred_region
      %138 = vsyncadd [#allocation4], 0
      %s140 = sshll.u32 [#allocation8], 4
      %s141 = int_to_ptr.vmem [resolvable:$true] %s140
      %s142 = sshll.u32 %s3, 4
      %s143 = int_to_ptr.hbm [resolvable:$true] %s142
      %145 = dma.vmem_to_hbm [thread:$0]  %s141, 256, %s143, [#allocation4]
    $region29: #{tpu_custom_call.1} parent=1 // pred_fallthru
      _
    // Predicated region
    $region30: #{tpu_custom_call.1} parent=1 // pred_check
      _
    $region31: #{tpu_custom_call.1} parent=1 // pred_check_branch
      %147 = sbr.rel (0) target = $region33
    $region32: #{tpu_custom_call.1} parent=1 // pred_region
      %149 = dma.done [#allocation4], 256
    $region33: #{tpu_custom_call.1} parent=1 // pred_fallthru
      _
    %150 = vsyncpa [#allocation3], 1
    %151 = vsyncpa [#allocation6], 1
    %152 = vsyncpa [#allocation4], 1

</llo_original>
